<compile_context>
chip_gen: v7x
topology: tpu7x:2x2x1
jax: 0.10.0
libtpu: 0.0.40
codegen_flags: <defaults>
</compile_context>

<pallas_src>
import math

import jax
import jax.numpy as jnp
from jax.experimental import pallas as pl
from jax.experimental.pallas import tpu as pltpu


def _round_up(x, m):
    return ((x + m - 1) // m) * m


def _make_kernel(f_in):
    """Kernel closure; f_in is the index of the all-ones (degree) feature column."""

    def kernel(adj_ref, fsrc_ref, fdst_ref,
               w1_ref, b1_ref, w2_ref, b2_ref, wself_ref, bself_ref,
               out_ref, acc_ref):
        k = pl.program_id(1)
        nk = pl.num_programs(1)

        # --- init accumulator at the start of the source-node reduction ---
        @pl.when(k == 0)
        def _init():
            acc_ref[...] = jnp.zeros_like(acc_ref)

        # --- accumulate partial neighbor sums (degree rides along in col f_in) ---
        acc_ref[...] += jnp.dot(adj_ref[...], fsrc_ref[...],
                                preferred_element_type=jnp.float32)

        # --- finalize: normalize, MLP, self path, store (only once per dst tile) ---
        @pl.when(k == nk - 1)
        def _finalize():
            acc = acc_ref[...]                                   # (tm, fp_in) f32
            deg = acc[:, f_in:f_in + 1]                          # (tm, 1)
            inv_deg = jnp.where(deg > 0.0,
                                pl.reciprocal(deg, approx=True),
                                0.0)
            h = acc * inv_deg                                    # mean aggregation

            # MLP (BN folded into w/b): linear1 -> relu -> linear2
            x = jnp.dot(h.astype(jnp.bfloat16), w1_ref[...],
                        preferred_element_type=jnp.float32) + b1_ref[...]
            x = jnp.maximum(x, 0.0)
            x = jnp.dot(x.astype(jnp.bfloat16), w2_ref[...],
                        preferred_element_type=jnp.float32) + b2_ref[...]
            h_neigh = jnp.maximum(x, 0.0)                        # not last_layer

            # fc_self on the dst-node features
            h_self = jnp.dot(fdst_ref[...], wself_ref[...],
                             preferred_element_type=jnp.float32) + bself_ref[...]

            out_ref[...] = (h_self + h_neigh).astype(out_ref.dtype)

    return kernel


def graphsage_layer(adj, feat, params, *, tile_m=256, tile_k=1024):
    """GraphSAGE 'mean' layer (eval mode) as one tiled Pallas call."""
    n_dst, n_src = adj.shape
    f_in = feat.shape[1]
    f_out = params["w_self"].shape[1]

    # Lane-dense padded feature dims; +1 column carries the degree ("ones") feature.
    fp_in = _round_up(f_in + 1, 128)
    fp_out = _round_up(f_out, 128)

    # Tile sizes: multiples of 128, clipped for small graphs.
    tile_m = min(tile_m, _round_up(n_dst, 128))
    tile_k = min(tile_k, _round_up(n_src, 128))
    np_m = _round_up(n_dst, tile_m)
    np_k = _round_up(n_src, tile_k)
    np_feat = max(np_m, np_k)

    # Pad + cast the O(N^2)/O(N*F) operands to bf16 (0/1 adj is exact in bf16).
    adj_p = jnp.zeros((np_m, np_k), jnp.bfloat16)
    adj_p = adj_p.at[:n_dst, :n_src].set(adj.astype(jnp.bfloat16))

    feat_p = jnp.zeros((np_feat, fp_in), jnp.bfloat16)
    feat_p = feat_p.at[:n_src, :f_in].set(feat.astype(jnp.bfloat16))
    feat_p = feat_p.at[:, f_in].set(jnp.bfloat16(1.0))     # degree column

    # Fold eval-mode BatchNorm affine into the MLP linears (host side, f32).
    w1 = params["w1"] * params["bn1_scale"]
    b1 = params["b1"] * params["bn1_scale"] + params["bn1_shift"]
    w2 = params["w2"] * params["bn2_scale"]
    b2 = params["b2"] * params["bn2_scale"] + params["bn2_shift"]

    def pad_w(w, rows, cols):
        out = jnp.zeros((rows, cols), jnp.bfloat16)
        return out.at[: w.shape[0], : w.shape[1]].set(w.astype(jnp.bfloat16))

    def pad_b(b, cols):
        out = jnp.zeros((1, cols), jnp.float32)
        return out.at[:, : b.shape[1]].set(b.astype(jnp.float32))

    w1_p = pad_w(w1, fp_in, fp_out)
    w2_p = pad_w(w2, fp_out, fp_out)
    ws_p = pad_w(params["w_self"], fp_in, fp_out)
    b1_p = pad_b(b1, fp_out)
    b2_p = pad_b(b2, fp_out)
    bs_p = pad_b(params["b_self"], fp_out)

    grid = (np_m // tile_m, np_k // tile_k)

    in_specs = [
        pl.BlockSpec((tile_m, tile_k), lambda i, k: (i, k)),   # adj tile
        pl.BlockSpec((tile_k, fp_in), lambda i, k: (k, 0)),    # feat (src rows)
        pl.BlockSpec((tile_m, fp_in), lambda i, k: (i, 0)),    # feat (dst rows)
        pl.BlockSpec((fp_in, fp_out), lambda i, k: (0, 0)),    # w1 (BN folded)
        pl.BlockSpec((1, fp_out), lambda i, k: (0, 0)),        # b1
        pl.BlockSpec((fp_out, fp_out), lambda i, k: (0, 0)),   # w2 (BN folded)
        pl.BlockSpec((1, fp_out), lambda i, k: (0, 0)),        # b2
        pl.BlockSpec((fp_in, fp_out), lambda i, k: (0, 0)),    # w_self
        pl.BlockSpec((1, fp_out), lambda i, k: (0, 0)),        # b_self
    ]
    out_spec = pl.BlockSpec((tile_m, fp_out), lambda i, k: (i, 0))

    out_p = pl.pallas_call(
        _make_kernel(f_in),
        out_shape=jax.ShapeDtypeStruct((np_m, fp_out), jnp.float32),
        grid_spec=pltpu.PrefetchScalarGridSpec(
            num_scalar_prefetch=0,
            grid=grid,
            in_specs=in_specs,
            out_specs=out_spec,
            scratch_shapes=[pltpu.VMEM((tile_m, fp_in), jnp.float32)],
        ),
        compiler_params=pltpu.CompilerParams(
            dimension_semantics=("parallel", "arbitrary"),
            vmem_limit_bytes=32 * 1024 * 1024,
        ),
    )(adj_p, feat_p, feat_p, w1_p, b1_p, w2_p, b2_p, ws_p, bs_p)

    return out_p[:n_dst, :f_out]


# ---------------- deterministic parameter construction ----------------
def xavier_uniform(key, out_feats, in_feats, gain):
    # PyTorch xavier_uniform_ on weight of shape (out, in), then transpose -> (in, out)
    bound = gain * math.sqrt(6.0 / (in_feats + out_feats))
    w = jax.random.uniform(key, (out_feats, in_feats), jnp.float32, -bound, bound)
    return w.T


def linear_bias(key, in_feats, out_feats):
    # PyTorch nn.Linear default bias init: U(-1/sqrt(fan_in), 1/sqrt(fan_in))
    bound = 1.0 / math.sqrt(in_feats)
    return jax.random.uniform(key, (1, out_feats), jnp.float32, -bound, bound)


def make_params(key, in_feats, out_feats):
    gain = math.sqrt(2.0)  # calculate_gain('relu')
    keys = jax.random.split(key, 6)
    eps = 1e-5
    # BatchNorm1d eval-mode with default state: gamma=1, beta=0, mean=0, var=1
    bn_scale = jnp.full((1, out_feats), 1.0 / math.sqrt(1.0 + eps), jnp.float32)
    bn_shift = jnp.zeros((1, out_feats), jnp.float32)
    return {
        "w1": xavier_uniform(keys[0], out_feats, in_feats, gain),
        "b1": linear_bias(keys[1], in_feats, out_feats),
        "bn1_scale": bn_scale, "bn1_shift": bn_shift,
        "w2": xavier_uniform(keys[2], out_feats, out_feats, gain),
        "b2": linear_bias(keys[3], out_feats, out_feats),
        "bn2_scale": bn_scale, "bn2_shift": bn_shift,
        "w_self": xavier_uniform(keys[4], out_feats, in_feats, gain),
        "b_self": linear_bias(keys[5], in_feats, out_feats),
    }


def reference(adj, feat, p):
    # Pure-JAX f32 reference with the *unfolded* BatchNorm affine (validates the
    # host-side BN folding done in graphsage_layer).
    deg = jnp.sum(adj, axis=1, keepdims=True)
    inv_deg = jnp.where(deg > 0.0, 1.0 / deg, 0.0)
    h_neigh = (adj @ feat) * inv_deg
    x = h_neigh @ p["w1"] + p["b1"]
    x = x * p["bn1_scale"] + p["bn1_shift"]
    x = jnp.maximum(x, 0.0)
    x = x @ p["w2"] + p["b2"]
    x = x * p["bn2_scale"] + p["bn2_shift"]
    h_neigh = jnp.maximum(x, 0.0)
    h_self = feat @ p["w_self"] + p["b_self"]
    return h_self + h_neigh


if __name__ == "__main__":
    N, F_IN, F_OUT = 16, 32, 32
    key = jax.random.PRNGKey(0)
    k_feat, k_adj, k_param = jax.random.split(key, 3)

    feat = jax.random.normal(k_feat, (N, F_IN), jnp.float32)
    adj = jax.random.bernoulli(k_adj, 0.3, (N, N)).astype(jnp.float32)
    params = make_params(k_param, F_IN, F_OUT)

    out = graphsage_layer(adj, feat, params)
    out = jax.block_until_ready(out)

    ref = reference(adj, feat, params)
    assert out.shape == (N, F_OUT)
    # bf16 matmul inputs + approx reciprocal -> looser tolerance than pure f32.
    assert jnp.allclose(out, ref, atol=5e-2, rtol=5e-2)

    print("KERNEL_OK")
</pallas_src>

<mosaic_0001>
module attributes {stable_mosaic.version = 11 : i64} {
  func.func @kernel(%arg0: i32, %arg1: i32, %arg2: memref<128x128xbf16, #tpu.memory_space<vmem>>, %arg3: memref<128x128xbf16, #tpu.memory_space<vmem>>, %arg4: memref<128x128xbf16, #tpu.memory_space<vmem>>, %arg5: memref<128x128xbf16, #tpu.memory_space<vmem>>, %arg6: memref<1x128xf32, #tpu.memory_space<vmem>>, %arg7: memref<128x128xbf16, #tpu.memory_space<vmem>>, %arg8: memref<1x128xf32, #tpu.memory_space<vmem>>, %arg9: memref<128x128xbf16, #tpu.memory_space<vmem>>, %arg10: memref<1x128xf32, #tpu.memory_space<vmem>>, %arg11: memref<128x128xf32, #tpu.memory_space<vmem>>, %arg12: memref<128x128xf32, #tpu.memory_space<vmem>>) attributes {dimension_semantics = [#tpu.dimension_semantics<parallel>, #tpu.dimension_semantics<arbitrary>], iteration_bounds = array<i64: 1, 1>, scalar_prefetch = 0 : i64, scratch_operands = 1 : i64, tpu.core_type = #tpu.core_type<tc>, window_params = [{transform_indices = @transform_0, window_bounds = array<i64: 128, 128>}, {transform_indices = @transform_1, window_bounds = array<i64: 128, 128>}, {transform_indices = @transform_2, window_bounds = array<i64: 128, 128>}, {pipeline_mode = #tpu.pipeline_mode<synchronous>, transform_indices = @transform_3, window_bounds = array<i64: 128, 128>}, {pipeline_mode = #tpu.pipeline_mode<synchronous>, transform_indices = @transform_4, window_bounds = array<i64: 1, 128>}, {pipeline_mode = #tpu.pipeline_mode<synchronous>, transform_indices = @transform_5, window_bounds = array<i64: 128, 128>}, {pipeline_mode = #tpu.pipeline_mode<synchronous>, transform_indices = @transform_6, window_bounds = array<i64: 1, 128>}, {pipeline_mode = #tpu.pipeline_mode<synchronous>, transform_indices = @transform_7, window_bounds = array<i64: 128, 128>}, {pipeline_mode = #tpu.pipeline_mode<synchronous>, transform_indices = @transform_8, window_bounds = array<i64: 1, 128>}, {transform_indices = @transform_9, window_bounds = array<i64: 128, 128>}]} {
    %c0_i32 = arith.constant 0 : i32
    %0 = arith.cmpi eq, %arg1, %c0_i32 : i32
    %1 = arith.extui %0 : i1 to i32
    %c0_i32_0 = arith.constant 0 : i32
    %2 = arith.cmpi ne, %1, %c0_i32_0 : i32
    scf.if %2 {
      %cst_10 = arith.constant 0.000000e+00 : f32
      %12 = vector.broadcast %cst_10 : f32 to vector<128x128xf32>
      %c0_11 = arith.constant 0 : index
      %c0_12 = arith.constant 0 : index
      %13 = vector.load %arg12[%c0_11, %c0_12] : memref<128x128xf32, #tpu.memory_space<vmem>>, vector<128x128xf32>
      tpu.vector_store %arg12[%c0_11, %c0_12], %12 {strides = array<i32>} : memref<128x128xf32, #tpu.memory_space<vmem>>, vector<128x128xf32>,
    } else {
    }
    %c0 = arith.constant 0 : index
    %c0_1 = arith.constant 0 : index
    %3 = vector.load %arg12[%c0, %c0_1] : memref<128x128xf32, #tpu.memory_space<vmem>>, vector<128x128xf32>
    %c0_2 = arith.constant 0 : index
    %c0_3 = arith.constant 0 : index
    %4 = vector.load %arg2[%c0_2, %c0_3] : memref<128x128xbf16, #tpu.memory_space<vmem>>, vector<128x128xbf16>
    %c0_4 = arith.constant 0 : index
    %c0_5 = arith.constant 0 : index
    %5 = vector.load %arg3[%c0_4, %c0_5] : memref<128x128xbf16, #tpu.memory_space<vmem>>, vector<128x128xbf16>
    %cst = arith.constant dense<0.000000e+00> : vector<128x128xf32>
    %6 = tpu.matmul %4, %5, %cst {dimension_numbers = #tpu.dot_dimension_numbers<[1], [0], [0], [1], [0, 0, 1, 1], [], []>} : vector<128x128xbf16>, vector<128x128xbf16>, vector<128x128xf32> -> vector<128x128xf32>
    %7 = arith.addf %3, %6 : vector<128x128xf32>
    %c0_6 = arith.constant 0 : index
    %c0_7 = arith.constant 0 : index
    %8 = vector.load %arg12[%c0_6, %c0_7] : memref<128x128xf32, #tpu.memory_space<vmem>>, vector<128x128xf32>
    tpu.vector_store %arg12[%c0_6, %c0_7], %7 {strides = array<i32>} : memref<128x128xf32, #tpu.memory_space<vmem>>, vector<128x128xf32>,
    %c0_i32_8 = arith.constant 0 : i32
    %9 = arith.cmpi eq, %arg1, %c0_i32_8 : i32
    %10 = arith.extui %9 : i1 to i32
    %c0_i32_9 = arith.constant 0 : i32
    %11 = arith.cmpi ne, %10, %c0_i32_9 : i32
    scf.if %11 {
      %c0_10 = arith.constant 0 : index
      %c0_11 = arith.constant 0 : index
      %12 = vector.load %arg12[%c0_10, %c0_11] : memref<128x128xf32, #tpu.memory_space<vmem>>, vector<128x128xf32>
      %13 = vector.extract_strided_slice %12 {offsets = [0, 32], sizes = [128, 1], strides = [1, 1]} : vector<128x128xf32> to vector<128x1xf32>
      %cst_12 = arith.constant 0.000000e+00 : f32
      %14 = vector.broadcast %cst_12 : f32 to vector<128x1xf32>
      %15 = arith.cmpf ogt, %13, %14 : vector<128x1xf32>
      %16 = tpu.reciprocal %13 {approx = true} : vector<128x1xf32> -> vector<128x1xf32>
      %cst_13 = arith.constant 0.000000e+00 : f32
      %17 = vector.broadcast %cst_13 : f32 to vector<128x1xf32>
      %18 = arith.select %15, %16, %17 : vector<128x1xi1>, vector<128x1xf32>
      %19 = vector.broadcast %18 : vector<128x1xf32> to vector<128x128xf32>
      %20 = arith.mulf %12, %19 : vector<128x128xf32>
      %21 = arith.truncf %20 : vector<128x128xf32> to vector<128x128xbf16>
      %c0_14 = arith.constant 0 : index
      %c0_15 = arith.constant 0 : index
      %22 = vector.load %arg5[%c0_14, %c0_15] : memref<128x128xbf16, #tpu.memory_space<vmem>>, vector<128x128xbf16>
      %cst_16 = arith.constant dense<0.000000e+00> : vector<128x128xf32>
      %23 = tpu.matmul %21, %22, %cst_16 {dimension_numbers = #tpu.dot_dimension_numbers<[1], [0], [0], [1], [0, 0, 1, 1], [], []>} : vector<128x128xbf16>, vector<128x128xbf16>, vector<128x128xf32> -> vector<128x128xf32>
      %c0_17 = arith.constant 0 : index
      %c0_18 = arith.constant 0 : index
      %24 = vector.load %arg6[%c0_17, %c0_18] : memref<1x128xf32, #tpu.memory_space<vmem>>, vector<1x128xf32>
      %25 = vector.broadcast %24 : vector<1x128xf32> to vector<128x128xf32>
      %26 = arith.addf %23, %25 : vector<128x128xf32>
      %cst_19 = arith.constant 0.000000e+00 : f32
      %27 = vector.broadcast %cst_19 : f32 to vector<128x128xf32>
      %28 = arith.maximumf %26, %27 : vector<128x128xf32>
      %29 = arith.truncf %28 : vector<128x128xf32> to vector<128x128xbf16>
      %c0_20 = arith.constant 0 : index
      %c0_21 = arith.constant 0 : index
      %30 = vector.load %arg7[%c0_20, %c0_21] : memref<128x128xbf16, #tpu.memory_space<vmem>>, vector<128x128xbf16>
      %cst_22 = arith.constant dense<0.000000e+00> : vector<128x128xf32>
      %31 = tpu.matmul %29, %30, %cst_22 {dimension_numbers = #tpu.dot_dimension_numbers<[1], [0], [0], [1], [0, 0, 1, 1], [], []>} : vector<128x128xbf16>, vector<128x128xbf16>, vector<128x128xf32> -> vector<128x128xf32>
      %c0_23 = arith.constant 0 : index
      %c0_24 = arith.constant 0 : index
      %32 = vector.load %arg8[%c0_23, %c0_24] : memref<1x128xf32, #tpu.memory_space<vmem>>, vector<1x128xf32>
      %33 = vector.broadcast %32 : vector<1x128xf32> to vector<128x128xf32>
      %34 = arith.addf %31, %33 : vector<128x128xf32>
      %cst_25 = arith.constant 0.000000e+00 : f32
      %35 = vector.broadcast %cst_25 : f32 to vector<128x128xf32>
      %36 = arith.maximumf %34, %35 : vector<128x128xf32>
      %c0_26 = arith.constant 0 : index
      %c0_27 = arith.constant 0 : index
      %37 = vector.load %arg4[%c0_26, %c0_27] : memref<128x128xbf16, #tpu.memory_space<vmem>>, vector<128x128xbf16>
      %c0_28 = arith.constant 0 : index
      %c0_29 = arith.constant 0 : index
      %38 = vector.load %arg9[%c0_28, %c0_29] : memref<128x128xbf16, #tpu.memory_space<vmem>>, vector<128x128xbf16>
      %cst_30 = arith.constant dense<0.000000e+00> : vector<128x128xf32>
      %39 = tpu.matmul %37, %38, %cst_30 {dimension_numbers = #tpu.dot_dimension_numbers<[1], [0], [0], [1], [0, 0, 1, 1], [], []>} : vector<128x128xbf16>, vector<128x128xbf16>, vector<128x128xf32> -> vector<128x128xf32>
      %c0_31 = arith.constant 0 : index
      %c0_32 = arith.constant 0 : index
      %40 = vector.load %arg10[%c0_31, %c0_32] : memref<1x128xf32, #tpu.memory_space<vmem>>, vector<1x128xf32>
      %41 = vector.broadcast %40 : vector<1x128xf32> to vector<128x128xf32>
      %42 = arith.addf %39, %41 : vector<128x128xf32>
      %43 = arith.addf %42, %36 : vector<128x128xf32>
      %c0_33 = arith.constant 0 : index
      %c0_34 = arith.constant 0 : index
      %44 = vector.load %arg11[%c0_33, %c0_34] : memref<128x128xf32, #tpu.memory_space<vmem>>, vector<128x128xf32>
      tpu.vector_store %arg11[%c0_33, %c0_34], %43 {strides = array<i32>} : memref<128x128xf32, #tpu.memory_space<vmem>>, vector<128x128xf32>,
    } else {
    }
    return
  }
  func.func @transform_0(%arg0: i32, %arg1: i32) -> (i32, i32) {
    %c0_i32 = arith.constant 0 : i32
    return %arg0, %arg1 : i32, i32
  }
  func.func @transform_1(%arg0: i32, %arg1: i32) -> (i32, i32) {
    %c0_i32 = arith.constant 0 : i32
    %c0_i32_0 = arith.constant 0 : i32
    return %arg1, %c0_i32 : i32, i32
  }
  func.func @transform_2(%arg0: i32, %arg1: i32) -> (i32, i32) {
    %c0_i32 = arith.constant 0 : i32
    %c0_i32_0 = arith.constant 0 : i32
    return %arg0, %c0_i32 : i32, i32
  }
  func.func @transform_3(%arg0: i32, %arg1: i32) -> (i32, i32) {
    %c0_i32 = arith.constant 0 : i32
    %c0_i32_0 = arith.constant 0 : i32
    %c0_i32_1 = arith.constant 0 : i32
    return %c0_i32, %c0_i32_0 : i32, i32
  }
  func.func @transform_4(%arg0: i32, %arg1: i32) -> (i32, i32) {
    %c0_i32 = arith.constant 0 : i32
    %c0_i32_0 = arith.constant 0 : i32
    %c0_i32_1 = arith.constant 0 : i32
    return %c0_i32, %c0_i32_0 : i32, i32
  }
  func.func @transform_5(%arg0: i32, %arg1: i32) -> (i32, i32) {
    %c0_i32 = arith.constant 0 : i32
    %c0_i32_0 = arith.constant 0 : i32
    %c0_i32_1 = arith.constant 0 : i32
    return %c0_i32, %c0_i32_0 : i32, i32
  }
  func.func @transform_6(%arg0: i32, %arg1: i32) -> (i32, i32) {
    %c0_i32 = arith.constant 0 : i32
    %c0_i32_0 = arith.constant 0 : i32
    %c0_i32_1 = arith.constant 0 : i32
    return %c0_i32, %c0_i32_0 : i32, i32
  }
  func.func @transform_7(%arg0: i32, %arg1: i32) -> (i32, i32) {
    %c0_i32 = arith.constant 0 : i32
    %c0_i32_0 = arith.constant 0 : i32
    %c0_i32_1 = arith.constant 0 : i32
    return %c0_i32, %c0_i32_0 : i32, i32
  }
  func.func @transform_8(%arg0: i32, %arg1: i32) -> (i32, i32) {
    %c0_i32 = arith.constant 0 : i32
    %c0_i32_0 = arith.constant 0 : i32
    %c0_i32_1 = arith.constant 0 : i32
    return %c0_i32, %c0_i32_0 : i32, i32
  }
  func.func @transform_9(%arg0: i32, %arg1: i32) -> (i32, i32) {
    %c0_i32 = arith.constant 0 : i32
    %c0_i32_0 = arith.constant 0 : i32
    return %arg0, %c0_i32 : i32, i32
  }
}

</mosaic_0001>

<llo_original>
// kernel: tpu_custom_call.1
$region0: #{tpu_custom_call.1}
  #allocation0 [shape = 'u32[]', space=smem, size = 0x4, offset = 0x4, fixed_abs, tag = 'smem constant byte address 0x4 - core index']
  #allocation1 [shape = 'u32[144,128]{1,0:T(1,128)}', space=vmem, size = 0x12000, scoped, tag = 'internal scratch']
  #allocation2 [shape = 'f32[128,128]{1,0:T(8,128)}', space=vmem, size = 0x10000, scoped, tag = 'scratch operand']
  %s0 = inlined_call_operand.hbm [shape: bf16[128,128], index: 0, kind: input, shape index: {}]
  %s1 = inlined_call_operand.hbm [shape: bf16[128,128], index: 1, kind: input, shape index: {}]
  %s2 = inlined_call_operand.hbm [shape: bf16[128,128], index: 2, kind: input, shape index: {}]
  %s3 = inlined_call_operand.hbm [shape: bf16[128,128], index: 3, kind: input, shape index: {}]
  %s4 = inlined_call_operand.vmem [shape: f32[1,128], index: 4, kind: input, shape index: {}]
  %s5 = inlined_call_operand.hbm [shape: bf16[128,128], index: 5, kind: input, shape index: {}]
  %s6 = inlined_call_operand.vmem [shape: f32[1,128], index: 6, kind: input, shape index: {}]
  %s7 = inlined_call_operand.hbm [shape: bf16[128,128], index: 7, kind: input, shape index: {}]
  %s8 = inlined_call_operand.vmem [shape: f32[1,128], index: 8, kind: input, shape index: {}]
  %s9 = inlined_call_operand.hbm [shape: f32[128,128], index: 9, kind: output, shape index: {}]
  %s10 = sld [smem:[#allocation0]]
  $region78: #{tpu_custom_call.1} parent=0
    _
  %s12 = ssub.s32 1, %s10
  %s13 = scalar_select 0, %s12, %s10
  $region1: #{tpu_custom_call.1} parent=0
    #allocation3 [shape = 'u8[32768]{0}', space=vmem, size = 0x8000, scoped, tag = 'input window, operand 0, single buffered']
    #allocation4 [shape = 's32[1]{0}', space=sflag, size = 0x4, scoped, tag = 'scoped memory for tpu_custom_call.1']
    #allocation5 [shape = 's32[1]{0}', space=sflag, size = 0x4, scoped, tag = 'scoped memory for tpu_custom_call.1']
    #allocation6 [shape = 'u8[32768]{0}', space=vmem, size = 0x8000, scoped, tag = 'input window, operand 1, single buffered']
    #allocation7 [shape = 's32[1]{0}', space=sflag, size = 0x4, scoped, tag = 'scoped memory for tpu_custom_call.1']
    #allocation8 [shape = 'u8[32768]{0}', space=vmem, size = 0x8000, scoped, tag = 'input window, operand 2, single buffered']
    #allocation9 [shape = 'u8[32768]{0}', space=vmem, size = 0x8000, scoped, tag = 'input window, operand 3, single buffered']
    #allocation10 [shape = 's32[1]{0}', space=sflag, size = 0x4, scoped, tag = 'scoped memory for tpu_custom_call.1']
    #allocation11 [shape = 'u8[32768]{0}', space=vmem, size = 0x8000, scoped, tag = 'input window, operand 5, single buffered']
    #allocation12 [shape = 'u8[32768]{0}', space=vmem, size = 0x8000, scoped, tag = 'input window, operand 7, single buffered']
    #allocation13 [shape = 's32[1]{0}', space=sflag, size = 0x4, scoped, tag = 'scoped memory for tpu_custom_call.1']
    #allocation14 [shape = 'u8[65536]{0}', space=vmem, size = 0x10000, scoped, tag = 'output window, operand 0, single buffered']
    %14 = vsyncpa [#allocation4], 0
    %15 = vsyncpa [#allocation7], 0
    %16 = vsyncpa [#allocation10], 0
    %17 = vsyncpa [#allocation13], 0
    %18 = vsyncpa [#allocation5], 0
    // Predicated region
    $region2: #{tpu_custom_call.1} parent=1 // pred_check
      _
    $region3: #{tpu_custom_call.1} parent=1 // pred_check_branch
      %20 = sbr.rel (0) target = $region5
    $region4: #{tpu_custom_call.1} parent=1 // pred_region
      %s22 = ssub.s32 1024, 1024
      %23 = vsyncadd [#allocation4], %s22
      %s24 = sshll.u32 [#allocation3], 4
      %s25 = int_to_ptr.vmem [resolvable:$true] %s24
      %30 = dma.hbm_to_vmem [thread:$0]  %s0, 1024, %s25, [#allocation4], 64, 64, 4
    $region5: #{tpu_custom_call.1} parent=1 // pred_fallthru
      _
    // Predicated region
    $region6: #{tpu_custom_call.1} parent=1 // pred_check
      _
    $region7: #{tpu_custom_call.1} parent=1 // pred_check_branch
      %32 = sbr.rel (0) target = $region9
    $region8: #{tpu_custom_call.1} parent=1 // pred_region
      %s34 = ssub.s32 1024, 1024
      %35 = vsyncadd [#allocation7], %s34
      %s36 = sshll.u32 [#allocation6], 4
      %s37 = int_to_ptr.vmem [resolvable:$true] %s36
      %42 = dma.hbm_to_vmem [thread:$0]  %s1, 1024, %s37, [#allocation7], 64, 64, 4
    $region9: #{tpu_custom_call.1} parent=1 // pred_fallthru
      _
    // Predicated region
    $region10: #{tpu_custom_call.1} parent=1 // pred_check
      _
    $region11: #{tpu_custom_call.1} parent=1 // pred_check_branch
      %44 = sbr.rel (0) target = $region13
    $region12: #{tpu_custom_call.1} parent=1 // pred_region
      %s46 = ssub.s32 1024, 1024
      %47 = vsyncadd [#allocation7], %s46
      %s48 = sshll.u32 [#allocation8], 4
      %s49 = int_to_ptr.vmem [resolvable:$true] %s48
      %54 = dma.hbm_to_vmem [thread:$0]  %s2, 1024, %s49, [#allocation7], 64, 64, 4
    $region13: #{tpu_custom_call.1} parent=1 // pred_fallthru
      _
    // Predicated region
    $region14: #{tpu_custom_call.1} parent=1 // pred_check
      _
    $region15: #{tpu_custom_call.1} parent=1 // pred_check_branch
      %56 = sbr.rel (0) target = $region17
    $region16: #{tpu_custom_call.1} parent=1 // pred_region
      %s58 = ssub.s32 1024, 1024
      %59 = vsyncadd [#allocation10], %s58
      %s60 = sshll.u32 [#allocation9], 4
      %s61 = int_to_ptr.vmem [resolvable:$true] %s60
      %66 = dma.hbm_to_vmem [thread:$0]  %s3, 1024, %s61, [#allocation10], 64, 64, 4
    $region17: #{tpu_custom_call.1} parent=1 // pred_fallthru
      _
    // Predicated region
    $region18: #{tpu_custom_call.1} parent=1 // pred_check
      _
    $region19: #{tpu_custom_call.1} parent=1 // pred_check_branch
      %68 = sbr.rel (0) target = $region21
    $region20: #{tpu_custom_call.1} parent=1 // pred_region
      _
    $region21: #{tpu_custom_call.1} parent=1 // pred_fallthru
      _
    // Predicated region
    $region22: #{tpu_custom_call.1} parent=1 // pred_check
      _
    $region23: #{tpu_custom_call.1} parent=1 // pred_check_branch
      %70 = sbr.rel (0) target = $region25
    $region24: #{tpu_custom_call.1} parent=1 // pred_region
      %s72 = ssub.s32 1024, 1024
      %73 = vsyncadd [#allocation10], %s72
      %s74 = sshll.u32 [#allocation11], 4
      %s75 = int_to_ptr.vmem [resolvable:$true] %s74
      %80 = dma.hbm_to_vmem [thread:$0]  %s5, 1024, %s75, [#allocation10], 64, 64, 4
    $region25: #{tpu_custom_call.1} parent=1 // pred_fallthru
      _
    // Predicated region
    $region26: #{tpu_custom_call.1} parent=1 // pred_check
      _
    $region27: #{tpu_custom_call.1} parent=1 // pred_check_branch
      %82 = sbr.rel (0) target = $region29
    $region28: #{tpu_custom_call.1} parent=1 // pred_region
      _
    $region29: #{tpu_custom_call.1} parent=1 // pred_fallthru
      _
    // Predicated region
    $region30: #{tpu_custom_call.1} parent=1 // pred_check
      _
    $region31: #{tpu_custom_call.1} parent=1 // pred_check_branch
      %84 = sbr.rel (0) target = $region33
    $region32: #{tpu_custom_call.1} parent=1 // pred_region
      %s86 = ssub.s32 1024, 1024
      %87 = vsyncadd [#allocation13], %s86
      %s88 = sshll.u32 [#allocation12], 4
      %s89 = int_to_ptr.vmem [resolvable:$true] %s88
      %94 = dma.hbm_to_vmem [thread:$0]  %s7, 1024, %s89, [#allocation13], 64, 64, 4
    $region33: #{tpu_custom_call.1} parent=1 // pred_fallthru
      _
    // Predicated region
    $region34: #{tpu_custom_call.1} parent=1 // pred_check
      _
    $region35: #{tpu_custom_call.1} parent=1 // pred_check_branch
      %96 = sbr.rel (0) target = $region37
    $region36: #{tpu_custom_call.1} parent=1 // pred_region
      _
    $region37: #{tpu_custom_call.1} parent=1 // pred_fallthru
      _
    // Predicated region
    $region38: #{tpu_custom_call.1} parent=1 // pred_check
      _
    $region39: #{tpu_custom_call.1} parent=1 // pred_check_branch
      %98 = sbr.rel (0) target = $region41
    $region40: #{tpu_custom_call.1} parent=1 // pred_region
      %99 = dma.done [#allocation4], 1024
    $region41: #{tpu_custom_call.1} parent=1 // pred_fallthru
      _
    // Predicated region
    $region42: #{tpu_custom_call.1} parent=1 // pred_check
      _
    $region43: #{tpu_custom_call.1} parent=1 // pred_check_branch
      %101 = sbr.rel (0) target = $region45
    $region44: #{tpu_custom_call.1} parent=1 // pred_region
      %102 = dma.done [#allocation7], 1024
    $region45: #{tpu_custom_call.1} parent=1 // pred_fallthru
      _
    // Predicated region
    $region46: #{tpu_custom_call.1} parent=1 // pred_check
      _
    $region47: #{tpu_custom_call.1} parent=1 // pred_check_branch
      %104 = sbr.rel (0) target = $region49
    $region48: #{tpu_custom_call.1} parent=1 // pred_region
      %105 = dma.done [#allocation7], 1024
    $region49: #{tpu_custom_call.1} parent=1 // pred_fallthru
      _
    // Predicated region
    $region50: #{tpu_custom_call.1} parent=1 // pred_check
      _
    $region51: #{tpu_custom_call.1} parent=1 // pred_check_branch
      %107 = sbr.rel (0) target = $region53
    $region52: #{tpu_custom_call.1} parent=1 // pred_region
      %108 = dma.done [#allocation10], 1024
    $region53: #{tpu_custom_call.1} parent=1 // pred_fallthru
      _
    // Predicated region
    $region54: #{tpu_custom_call.1} parent=1 // pred_check
      _
    $region55: #{tpu_custom_call.1} parent=1 // pred_check_branch
      %110 = sbr.rel (0) target = $region57
    $region56: #{tpu_custom_call.1} parent=1 // pred_region
      %111 = dma.done [#allocation10], 1024
    $region57: #{tpu_custom_call.1} parent=1 // pred_fallthru
      _
    // Predicated region
    $region58: #{tpu_custom_call.1} parent=1 // pred_check
      _
    $region59: #{tpu_custom_call.1} parent=1 // pred_check_branch
      %113 = sbr.rel (0) target = $region61
    $region60: #{tpu_custom_call.1} parent=1 // pred_region
      %114 = dma.done [#allocation13], 1024
    $region61: #{tpu_custom_call.1} parent=1 // pred_fallthru
      _
    %p116 = scmp.eq.s32.totalorder 0, 0
    // Predicated region
    $region62: #{tpu_custom_call.1} parent=1 // pred_check
      %p117 = pneg %p116
    $region63: #{tpu_custom_call.1} parent=1 // pred_check_branch
      %119 = sbr.rel (%p117) target = $region65
    $region64: #{tpu_custom_call.1} parent=1 // pred_region
      %120 = vst [vmem:[#allocation2] sm:$0xff] 0.0
      %121 = vst [vmem:[#allocation2 + $0x8] sm:$0xff] 0.0
      %122 = vst [vmem:[#allocation2 + $0x10] sm:$0xff] 0.0
      %123 = vst [vmem:[#allocation2 + $0x18] sm:$0xff] 0.0
      %124 = vst [vmem:[#allocation2 + $0x20] sm:$0xff] 0.0
      %125 = vst [vmem:[#allocation2 + $0x28] sm:$0xff] 0.0
      %126 = vst [vmem:[#allocation2 + $0x30] sm:$0xff] 0.0
      %127 = vst [vmem:[#allocation2 + $0x38] sm:$0xff] 0.0
      %128 = vst [vmem:[#allocation2 + $0x40] sm:$0xff] 0.0
      %129 = vst [vmem:[#allocation2 + $0x48] sm:$0xff] 0.0
      %130 = vst [vmem:[#allocation2 + $0x50] sm:$0xff] 0.0
      %131 = vst [vmem:[#allocation2 + $0x58] sm:$0xff] 0.0
      %132 = vst [vmem:[#allocation2 + $0x60] sm:$0xff] 0.0
      %133 = vst [vmem:[#allocation2 + $0x68] sm:$0xff] 0.0
      %134 = vst [vmem:[#allocation2 + $0x70] sm:$0xff] 0.0
      %135 = vst [vmem:[#allocation2 + $0x78] sm:$0xff] 0.0
    $region65: #{tpu_custom_call.1} parent=1 // pred_fallthru
      _
    %v136 = vld [vmem:[#allocation2] sm:$0xff]
    %v137 = vld [vmem:[#allocation2 + $0x8] sm:$0xff]
    %v138 = vld [vmem:[#allocation2 + $0x10] sm:$0xff]
    %v139 = vld [vmem:[#allocation2 + $0x18] sm:$0xff]
    %v140 = vld [vmem:[#allocation2 + $0x20] sm:$0xff]
    %v141 = vld [vmem:[#allocation2 + $0x28] sm:$0xff]
    %v142 = vld [vmem:[#allocation2 + $0x30] sm:$0xff]
    %v143 = vld [vmem:[#allocation2 + $0x38] sm:$0xff]
    %v144 = vld [vmem:[#allocation2 + $0x40] sm:$0xff]
    %v145 = vld [vmem:[#allocation2 + $0x48] sm:$0xff]
    %v146 = vld [vmem:[#allocation2 + $0x50] sm:$0xff]
    %v147 = vld [vmem:[#allocation2 + $0x58] sm:$0xff]
    %v148 = vld [vmem:[#allocation2 + $0x60] sm:$0xff]
    %v149 = vld [vmem:[#allocation2 + $0x68] sm:$0xff]
    %v150 = vld [vmem:[#allocation2 + $0x70] sm:$0xff]
    %v151 = vld [vmem:[#allocation2 + $0x78] sm:$0xff]
    %v152 = vld [vmem:[#allocation3] sm:$0xf]
    %v153 = vld [vmem:[#allocation3 + $0x4] sm:$0xf]
    %v154 = vld [vmem:[#allocation3 + $0x8] sm:$0xf]
    %v155 = vld [vmem:[#allocation3 + $0xc] sm:$0xf]
    %v156 = vld [vmem:[#allocation3 + $0x10] sm:$0xf]
    %v157 = vld [vmem:[#allocation3 + $0x14] sm:$0xf]
    %v158 = vld [vmem:[#allocation3 + $0x18] sm:$0xf]
    %v159 = vld [vmem:[#allocation3 + $0x1c] sm:$0xf]
    %v160 = vld [vmem:[#allocation3 + $0x20] sm:$0xf]
    %v161 = vld [vmem:[#allocation3 + $0x24] sm:$0xf]
    %v162 = vld [vmem:[#allocation3 + $0x28] sm:$0xf]
    %v163 = vld [vmem:[#allocation3 + $0x2c] sm:$0xf]
    %v164 = vld [vmem:[#allocation3 + $0x30] sm:$0xf]
    %v165 = vld [vmem:[#allocation3 + $0x34] sm:$0xf]
    %v166 = vld [vmem:[#allocation3 + $0x38] sm:$0xf]
    %v167 = vld [vmem:[#allocation3 + $0x3c] sm:$0xf]
    %v168 = vld [vmem:[#allocation6] sm:$0xf]
    %v169 = vld [vmem:[#allocation6 + $0x4] sm:$0xf]
    %v170 = vld [vmem:[#allocation6 + $0x8] sm:$0xf]
    %v171 = vld [vmem:[#allocation6 + $0xc] sm:$0xf]
    %v172 = vld [vmem:[#allocation6 + $0x10] sm:$0xf]
    %v173 = vld [vmem:[#allocation6 + $0x14] sm:$0xf]
    %v174 = vld [vmem:[#allocation6 + $0x18] sm:$0xf]
    %v175 = vld [vmem:[#allocation6 + $0x1c] sm:$0xf]
    %v176 = vld [vmem:[#allocation6 + $0x20] sm:$0xf]
    %v177 = vld [vmem:[#allocation6 + $0x24] sm:$0xf]
    %v178 = vld [vmem:[#allocation6 + $0x28] sm:$0xf]
    %v179 = vld [vmem:[#allocation6 + $0x2c] sm:$0xf]
    %v180 = vld [vmem:[#allocation6 + $0x30] sm:$0xf]
    %v181 = vld [vmem:[#allocation6 + $0x34] sm:$0xf]
    %v182 = vld [vmem:[#allocation6 + $0x38] sm:$0xf]
    %v183 = vld [vmem:[#allocation6 + $0x3c] sm:$0xf]
    %v200 = vunpack.c.l.b16 %v152
    %v201 = vunpack.c.l.b16 %v153
    %v202 = vunpack.c.l.b16 %v154
    %v203 = vunpack.c.l.b16 %v155
    %v204 = vunpack.c.l.b16 %v156
    %v205 = vunpack.c.l.b16 %v157
    %v206 = vunpack.c.l.b16 %v158
    %v207 = vunpack.c.l.b16 %v159
    %v208 = vunpack.c.l.b16 %v160
    %v209 = vunpack.c.l.b16 %v161
    %v210 = vunpack.c.l.b16 %v162
    %v211 = vunpack.c.l.b16 %v163
    %v212 = vunpack.c.l.b16 %v164
    %v213 = vunpack.c.l.b16 %v165
    %v214 = vunpack.c.l.b16 %v166
    %v215 = vunpack.c.l.b16 %v167
    %v216 = vpack.c.b16 %v201, %v200
    %v217 = vpack.c.b16 %v203, %v202
    %v218 = vpack.c.b16 %v205, %v204
    %v219 = vpack.c.b16 %v207, %v206
    %v220 = vpack.c.b16 %v209, %v208
    %v221 = vpack.c.b16 %v211, %v210
    %v222 = vpack.c.b16 %v213, %v212
    %v223 = vpack.c.b16 %v215, %v214
    %v248 = vunpack.c.l.b16 %v168
    %v249 = vunpack.c.l.b16 %v169
    %v250 = vunpack.c.l.b16 %v170
    %v251 = vunpack.c.l.b16 %v171
    %v252 = vunpack.c.l.b16 %v172
    %v253 = vunpack.c.l.b16 %v173
    %v254 = vunpack.c.l.b16 %v174
    %v255 = vunpack.c.l.b16 %v175
    %v256 = vunpack.c.l.b16 %v176
    %v257 = vunpack.c.l.b16 %v177
    %v258 = vunpack.c.l.b16 %v178
    %v259 = vunpack.c.l.b16 %v179
    %v260 = vunpack.c.l.b16 %v180
    %v261 = vunpack.c.l.b16 %v181
    %v262 = vunpack.c.l.b16 %v182
    %v263 = vunpack.c.l.b16 %v183
    %v264 = vpack.c.b16 %v249, %v248
    %v265 = vpack.c.b16 %v251, %v250
    %v266 = vpack.c.b16 %v253, %v252
    %v267 = vpack.c.b16 %v255, %v254
    %v268 = vpack.c.b16 %v257, %v256
    %v269 = vpack.c.b16 %v259, %v258
    %v270 = vpack.c.b16 %v261, %v260
    %v271 = vpack.c.b16 %v263, %v262
    %280 = vmatprep.subr.bf16.mxu0 0
    %281 = vmatpush1.bf16.msra.mxu0 %v264
    %282 = vmatprep.subr.bf16.mxu0 0
    %283 = vmatpush1.bf16.msra.mxu0 %v265
    %284 = vmatprep.subr.bf16.mxu0 0
    %285 = vmatpush1.bf16.msra.mxu0 %v266
    %286 = vmatprep.subr.bf16.mxu0 0
    %287 = vmatpush1.bf16.msra.mxu0 %v267
    %288 = vmatprep.subr.bf16.mxu0 0
    %289 = vmatpush1.bf16.msra.mxu0 %v268
    %290 = vmatprep.subr.bf16.mxu0 0
    %291 = vmatpush1.bf16.msra.mxu0 %v269
    %292 = vmatprep.subr.bf16.mxu0 0
    %293 = vmatpush1.bf16.msra.mxu0 %v270
    %294 = vmatprep.subr.bf16.mxu0 0
    %295 = vmatpush1.bf16.msra.mxu0 %v271
    %296 = vmatprep.subr.bf16.mxu0 0
    %297 = vmatpush1.bf16.msra.mxu0 0
    %298 = vmatprep.subr.bf16.mxu0 0
    %299 = vmatpush1.bf16.msra.mxu0 0
    %300 = vmatprep.subr.bf16.mxu0 0
    %301 = vmatpush1.bf16.msra.mxu0 0
    %302 = vmatprep.subr.bf16.mxu0 0
    %303 = vmatpush1.bf16.msra.mxu0 0
    %304 = vmatprep.subr.bf16.mxu0 0
    %305 = vmatpush1.bf16.msra.mxu0 0
    %306 = vmatprep.subr.bf16.mxu0 0
    %307 = vmatpush1.bf16.msra.mxu0 0
    %308 = vmatprep.subr.bf16.mxu0 0
    %309 = vmatpush1.bf16.msra.mxu0 0
    %310 = vmatprep.subr.bf16.mxu0 0
    %311 = vmatpush1.bf16.msra.mxu0 0
    %312 = vmatprep.mubr.bf16.mxu0 0
    %313 = vmatmul.mubr.bf16.gmra.mrb[0].mxu0 %v216
    %v314 = vpop.f32.mrb[0].mxu0
    %v315 = vadd.f32 0.0, %v314
    %v316 = vpop.f32.mrb[0].mxu0
    %v317 = vpop.f32.mrb[0].mxu0
    %v318 = vadd.f32 0.0, %v317
    %v319 = vpop.f32.mrb[0].mxu0
    %320 = vmatprep.mubr.bf16.mxu0 0
    %321 = vmatmul.mubr.bf16.gmra.mrb[0].mxu0 %v217
    %v322 = vpop.f32.mrb[0].mxu0
    %v323 = vadd.f32 0.0, %v322
    %v324 = vpop.f32.mrb[0].mxu0
    %v325 = vpop.f32.mrb[0].mxu0
    %v326 = vadd.f32 0.0, %v325
    %v327 = vpop.f32.mrb[0].mxu0
    %328 = vmatprep.mubr.bf16.mxu0 0
    %329 = vmatmul.mubr.bf16.gmra.mrb[0].mxu0 %v218
    %v330 = vpop.f32.mrb[0].mxu0
    %v331 = vadd.f32 0.0, %v330
    %v332 = vpop.f32.mrb[0].mxu0
    %v333 = vpop.f32.mrb[0].mxu0
    %v334 = vadd.f32 0.0, %v333
    %v335 = vpop.f32.mrb[0].mxu0
    %336 = vmatprep.mubr.bf16.mxu0 0
    %337 = vmatmul.mubr.bf16.gmra.mrb[0].mxu0 %v219
    %v338 = vpop.f32.mrb[0].mxu0
    %v339 = vadd.f32 0.0, %v338
    %v340 = vpop.f32.mrb[0].mxu0
    %v341 = vpop.f32.mrb[0].mxu0
    %v342 = vadd.f32 0.0, %v341
    %v343 = vpop.f32.mrb[0].mxu0
    %344 = vmatprep.mubr.bf16.mxu0 0
    %345 = vmatmul.mubr.bf16.gmra.mrb[0].mxu0 %v220
    %v346 = vpop.f32.mrb[0].mxu0
    %v347 = vadd.f32 0.0, %v346
    %v348 = vpop.f32.mrb[0].mxu0
    %v349 = vpop.f32.mrb[0].mxu0
    %v350 = vadd.f32 0.0, %v349
    %v351 = vpop.f32.mrb[0].mxu0
    %352 = vmatprep.mubr.bf16.mxu0 0
    %353 = vmatmul.mubr.bf16.gmra.mrb[0].mxu0 %v221
    %v354 = vpop.f32.mrb[0].mxu0
    %v355 = vadd.f32 0.0, %v354
    %v356 = vpop.f32.mrb[0].mxu0
    %v357 = vpop.f32.mrb[0].mxu0
    %v358 = vadd.f32 0.0, %v357
    %v359 = vpop.f32.mrb[0].mxu0
    %360 = vmatprep.mubr.bf16.mxu0 0
    %361 = vmatmul.mubr.bf16.gmra.mrb[0].mxu0 %v222
    %v362 = vpop.f32.mrb[0].mxu0
    %v363 = vadd.f32 0.0, %v362
    %v364 = vpop.f32.mrb[0].mxu0
    %v365 = vpop.f32.mrb[0].mxu0
    %v366 = vadd.f32 0.0, %v365
    %v367 = vpop.f32.mrb[0].mxu0
    %368 = vmatprep.mubr.bf16.mxu0 0
    %369 = vmatmul.mubr.bf16.gmra.mrb[0].mxu0 %v223
    %v370 = vpop.f32.mrb[0].mxu0
    %v371 = vadd.f32 0.0, %v370
    %v372 = vpop.f32.mrb[0].mxu0
    %v373 = vpop.f32.mrb[0].mxu0
    %v374 = vadd.f32 0.0, %v373
    %v375 = vpop.f32.mrb[0].mxu0
    %376 = vdwg.mxu0
    %v377 = vadd.f32 %v136, %v315
    %v378 = vadd.f32 %v137, %v318
    %v379 = vadd.f32 %v138, %v323
    %v380 = vadd.f32 %v139, %v326
    %v381 = vadd.f32 %v140, %v331
    %v382 = vadd.f32 %v141, %v334
    %v383 = vadd.f32 %v142, %v339
    %v384 = vadd.f32 %v143, %v342
    %v385 = vadd.f32 %v144, %v347
    %v386 = vadd.f32 %v145, %v350
    %v387 = vadd.f32 %v146, %v355
    %v388 = vadd.f32 %v147, %v358
    %v389 = vadd.f32 %v148, %v363
    %v390 = vadd.f32 %v149, %v366
    %v391 = vadd.f32 %v150, %v371
    %v392 = vadd.f32 %v151, %v374
    %393 = vst [vmem:[#allocation2] sm:$0xff] %v377
    %394 = vst [vmem:[#allocation2 + $0x8] sm:$0xff] %v378
    %395 = vst [vmem:[#allocation2 + $0x10] sm:$0xff] %v379
    %396 = vst [vmem:[#allocation2 + $0x18] sm:$0xff] %v380
    %397 = vst [vmem:[#allocation2 + $0x20] sm:$0xff] %v381
    %398 = vst [vmem:[#allocation2 + $0x28] sm:$0xff] %v382
    %399 = vst [vmem:[#allocation2 + $0x30] sm:$0xff] %v383
    %400 = vst [vmem:[#allocation2 + $0x38] sm:$0xff] %v384
    %401 = vst [vmem:[#allocation2 + $0x40] sm:$0xff] %v385
    %402 = vst [vmem:[#allocation2 + $0x48] sm:$0xff] %v386
    %403 = vst [vmem:[#allocation2 + $0x50] sm:$0xff] %v387
    %404 = vst [vmem:[#allocation2 + $0x58] sm:$0xff] %v388
    %405 = vst [vmem:[#allocation2 + $0x60] sm:$0xff] %v389
    %406 = vst [vmem:[#allocation2 + $0x68] sm:$0xff] %v390
    %407 = vst [vmem:[#allocation2 + $0x70] sm:$0xff] %v391
    %408 = vst [vmem:[#allocation2 + $0x78] sm:$0xff] %v392
    // Predicated region
    $region66: #{tpu_custom_call.1} parent=1 // pred_check
      %p409 = pneg %p116
    $region67: #{tpu_custom_call.1} parent=1 // pred_check_branch
      %411 = sbr.rel (%p409) target = $region69
    $region68: #{tpu_custom_call.1} parent=1 // pred_region
      %v412 = vld [vmem:[#allocation2] sm:$0xff]
      %v413 = vld [vmem:[#allocation2 + $0x8] sm:$0xff]
      %v414 = vld [vmem:[#allocation2 + $0x10] sm:$0xff]
      %v415 = vld [vmem:[#allocation2 + $0x18] sm:$0xff]
      %v416 = vld [vmem:[#allocation2 + $0x20] sm:$0xff]
      %v417 = vld [vmem:[#allocation2 + $0x28] sm:$0xff]
      %v418 = vld [vmem:[#allocation2 + $0x30] sm:$0xff]
      %v419 = vld [vmem:[#allocation2 + $0x38] sm:$0xff]
      %v420 = vld [vmem:[#allocation2 + $0x40] sm:$0xff]
      %v421 = vld [vmem:[#allocation2 + $0x48] sm:$0xff]
      %v422 = vld [vmem:[#allocation2 + $0x50] sm:$0xff]
      %v423 = vld [vmem:[#allocation2 + $0x58] sm:$0xff]
      %v424 = vld [vmem:[#allocation2 + $0x60] sm:$0xff]
      %v425 = vld [vmem:[#allocation2 + $0x68] sm:$0xff]
      %v426 = vld [vmem:[#allocation2 + $0x70] sm:$0xff]
      %v427 = vld [vmem:[#allocation2 + $0x78] sm:$0xff]
      %vm428 = vcmp.gt.f32.partialorder %v412, 0.0
      %vm429 = vcmp.gt.f32.partialorder %v413, 0.0
      %vm430 = vcmp.gt.f32.partialorder %v414, 0.0
      %vm431 = vcmp.gt.f32.partialorder %v415, 0.0
      %vm432 = vcmp.gt.f32.partialorder %v416, 0.0
      %vm433 = vcmp.gt.f32.partialorder %v417, 0.0
      %vm434 = vcmp.gt.f32.partialorder %v418, 0.0
      %vm435 = vcmp.gt.f32.partialorder %v419, 0.0
      %vm436 = vcmp.gt.f32.partialorder %v420, 0.0
      %vm437 = vcmp.gt.f32.partialorder %v421, 0.0
      %vm438 = vcmp.gt.f32.partialorder %v422, 0.0
      %vm439 = vcmp.gt.f32.partialorder %v423, 0.0
      %vm440 = vcmp.gt.f32.partialorder %v424, 0.0
      %vm441 = vcmp.gt.f32.partialorder %v425, 0.0
      %vm442 = vcmp.gt.f32.partialorder %v426, 0.0
      %vm443 = vcmp.gt.f32.partialorder %v427, 0.0
      %v444 = vrcp.pop %v412
      %v445 = vrcp.pop %v413
      %v446 = vrcp.pop %v414
      %v447 = vrcp.pop %v415
      %v448 = vrcp.pop %v416
      %v449 = vrcp.pop %v417
      %v450 = vrcp.pop %v418
      %v451 = vrcp.pop %v419
      %v452 = vrcp.pop %v420
      %v453 = vrcp.pop %v421
      %v454 = vrcp.pop %v422
      %v455 = vrcp.pop %v423
      %v456 = vrcp.pop %v424
      %v457 = vrcp.pop %v425
      %v458 = vrcp.pop %v426
      %v459 = vrcp.pop %v427
      %v460 = vsel %vm428, %v444, 0.0
      %v461 = vsel %vm429, %v445, 0.0
      %v462 = vsel %vm430, %v446, 0.0
      %v463 = vsel %vm431, %v447, 0.0
      %v464 = vsel %vm432, %v448, 0.0
      %v465 = vsel %vm433, %v449, 0.0
      %v466 = vsel %vm434, %v450, 0.0
      %v467 = vsel %vm435, %v451, 0.0
      %v468 = vsel %vm436, %v452, 0.0
      %v469 = vsel %vm437, %v453, 0.0
      %v470 = vsel %vm438, %v454, 0.0
      %v471 = vsel %vm439, %v455, 0.0
      %v472 = vsel %vm440, %v456, 0.0
      %v473 = vsel %vm441, %v457, 0.0
      %v474 = vsel %vm442, %v458, 0.0
      %v475 = vsel %vm443, %v459, 0.0
      %477 = vset.pattern.permute.xlu0 32
      %478 = vperm.xlu0 %477, %v460
      %v479 = vpop.permute.xlu0 %478
      %482 = vset.pattern.permute.xlu0 32
      %483 = vperm.xlu0 %482, %v461
      %v484 = vpop.permute.xlu0 %483
      %487 = vset.pattern.permute.xlu0 32
      %488 = vperm.xlu0 %487, %v462
      %v489 = vpop.permute.xlu0 %488
      %492 = vset.pattern.permute.xlu0 32
      %493 = vperm.xlu0 %492, %v463
      %v494 = vpop.permute.xlu0 %493
      %497 = vset.pattern.permute.xlu0 32
      %498 = vperm.xlu0 %497, %v464
      %v499 = vpop.permute.xlu0 %498
      %502 = vset.pattern.permute.xlu0 32
      %503 = vperm.xlu0 %502, %v465
      %v504 = vpop.permute.xlu0 %503
      %507 = vset.pattern.permute.xlu0 32
      %508 = vperm.xlu0 %507, %v466
      %v509 = vpop.permute.xlu0 %508
      %512 = vset.pattern.permute.xlu0 32
      %513 = vperm.xlu0 %512, %v467
      %v514 = vpop.permute.xlu0 %513
      %517 = vset.pattern.permute.xlu0 32
      %518 = vperm.xlu0 %517, %v468
      %v519 = vpop.permute.xlu0 %518
      %522 = vset.pattern.permute.xlu0 32
      %523 = vperm.xlu0 %522, %v469
      %v524 = vpop.permute.xlu0 %523
      %527 = vset.pattern.permute.xlu0 32
      %528 = vperm.xlu0 %527, %v470
      %v529 = vpop.permute.xlu0 %528
      %532 = vset.pattern.permute.xlu0 32
      %533 = vperm.xlu0 %532, %v471
      %v534 = vpop.permute.xlu0 %533
      %537 = vset.pattern.permute.xlu0 32
      %538 = vperm.xlu0 %537, %v472
      %v539 = vpop.permute.xlu0 %538
      %542 = vset.pattern.permute.xlu0 32
      %543 = vperm.xlu0 %542, %v473
      %v544 = vpop.permute.xlu0 %543
      %547 = vset.pattern.permute.xlu0 32
      %548 = vperm.xlu0 %547, %v474
      %v549 = vpop.permute.xlu0 %548
      %552 = vset.pattern.permute.xlu0 32
      %553 = vperm.xlu0 %552, %v475
      %v554 = vpop.permute.xlu0 %553
      %v556 = vmul.f32 %v412, %v479
      %v557 = vmul.f32 %v413, %v484
      %v558 = vmul.f32 %v414, %v489
      %v559 = vmul.f32 %v415, %v494
      %v560 = vmul.f32 %v416, %v499
      %v561 = vmul.f32 %v417, %v504
      %v562 = vmul.f32 %v418, %v509
      %v563 = vmul.f32 %v419, %v514
      %v564 = vmul.f32 %v420, %v519
      %v565 = vmul.f32 %v421, %v524
      %v566 = vmul.f32 %v422, %v529
      %v567 = vmul.f32 %v423, %v534
      %v568 = vmul.f32 %v424, %v539
      %v569 = vmul.f32 %v425, %v544
      %v570 = vmul.f32 %v426, %v549
      %v571 = vmul.f32 %v427, %v554
      %v572 = vpack.c.bf16 %v557, %v556
      %v573 = vpack.c.bf16 %v559, %v558
      %v574 = vpack.c.bf16 %v561, %v560
      %v575 = vpack.c.bf16 %v563, %v562
      %v576 = vpack.c.bf16 %v565, %v564
      %v577 = vpack.c.bf16 %v567, %v566
      %v578 = vpack.c.bf16 %v569, %v568
      %v579 = vpack.c.bf16 %v571, %v570
      %v580 = vld [vmem:[#allocation9] sm:$0xf]
      %v581 = vld [vmem:[#allocation9 + $0x4] sm:$0xf]
      %v582 = vld [vmem:[#allocation9 + $0x8] sm:$0xf]
      %v583 = vld [vmem:[#allocation9 + $0xc] sm:$0xf]
      %v584 = vld [vmem:[#allocation9 + $0x10] sm:$0xf]
      %v585 = vld [vmem:[#allocation9 + $0x14] sm:$0xf]
      %v586 = vld [vmem:[#allocation9 + $0x18] sm:$0xf]
      %v587 = vld [vmem:[#allocation9 + $0x1c] sm:$0xf]
      %v588 = vld [vmem:[#allocation9 + $0x20] sm:$0xf]
      %v589 = vld [vmem:[#allocation9 + $0x24] sm:$0xf]
      %v590 = vld [vmem:[#allocation9 + $0x28] sm:$0xf]
      %v591 = vld [vmem:[#allocation9 + $0x2c] sm:$0xf]
      %v592 = vld [vmem:[#allocation9 + $0x30] sm:$0xf]
      %v593 = vld [vmem:[#allocation9 + $0x34] sm:$0xf]
      %v594 = vld [vmem:[#allocation9 + $0x38] sm:$0xf]
      %v595 = vld [vmem:[#allocation9 + $0x3c] sm:$0xf]
      %v596 = vld [vmem:[%s4] sm:$0x1]
      %v598 = vlaneseq
      %v599 = vshrl.u32 %v598, 7
      %v600 = vsub.s32 0, %v599
      %v601 = vrot.slane %v596, %v600
      %v619 = vunpack.c.l.b16 %v580
      %v620 = vunpack.c.l.b16 %v581
      %v621 = vunpack.c.l.b16 %v582
      %v622 = vunpack.c.l.b16 %v583
      %v623 = vunpack.c.l.b16 %v584
      %v624 = vunpack.c.l.b16 %v585
      %v625 = vunpack.c.l.b16 %v586
      %v626 = vunpack.c.l.b16 %v587
      %v627 = vunpack.c.l.b16 %v588
      %v628 = vunpack.c.l.b16 %v589
      %v629 = vunpack.c.l.b16 %v590
      %v630 = vunpack.c.l.b16 %v591
      %v631 = vunpack.c.l.b16 %v592
      %v632 = vunpack.c.l.b16 %v593
      %v633 = vunpack.c.l.b16 %v594
      %v634 = vunpack.c.l.b16 %v595
      %v635 = vpack.c.b16 %v620, %v619
      %v636 = vpack.c.b16 %v622, %v621
      %v637 = vpack.c.b16 %v624, %v623
      %v638 = vpack.c.b16 %v626, %v625
      %v639 = vpack.c.b16 %v628, %v627
      %v640 = vpack.c.b16 %v630, %v629
      %v641 = vpack.c.b16 %v632, %v631
      %v642 = vpack.c.b16 %v634, %v633
      %651 = vmatprep.subr.bf16.mxu0 0
      %652 = vmatpush1.bf16.msra.mxu0 %v635
      %653 = vmatprep.subr.bf16.mxu0 0
      %654 = vmatpush1.bf16.msra.mxu0 %v636
      %655 = vmatprep.subr.bf16.mxu0 0
      %656 = vmatpush1.bf16.msra.mxu0 %v637
      %657 = vmatprep.subr.bf16.mxu0 0
      %658 = vmatpush1.bf16.msra.mxu0 %v638
      %659 = vmatprep.subr.bf16.mxu0 0
      %660 = vmatpush1.bf16.msra.mxu0 %v639
      %661 = vmatprep.subr.bf16.mxu0 0
      %662 = vmatpush1.bf16.msra.mxu0 %v640
      %663 = vmatprep.subr.bf16.mxu0 0
      %664 = vmatpush1.bf16.msra.mxu0 %v641
      %665 = vmatprep.subr.bf16.mxu0 0
      %666 = vmatpush1.bf16.msra.mxu0 %v642
      %667 = vmatprep.subr.bf16.mxu0 0
      %668 = vmatpush1.bf16.msra.mxu0 0
      %669 = vmatprep.subr.bf16.mxu0 0
      %670 = vmatpush1.bf16.msra.mxu0 0
      %671 = vmatprep.subr.bf16.mxu0 0
      %672 = vmatpush1.bf16.msra.mxu0 0
      %673 = vmatprep.subr.bf16.mxu0 0
      %674 = vmatpush1.bf16.msra.mxu0 0
      %675 = vmatprep.subr.bf16.mxu0 0
      %676 = vmatpush1.bf16.msra.mxu0 0
      %677 = vmatprep.subr.bf16.mxu0 0
      %678 = vmatpush1.bf16.msra.mxu0 0
      %679 = vmatprep.subr.bf16.mxu0 0
      %680 = vmatpush1.bf16.msra.mxu0 0
      %681 = vmatprep.subr.bf16.mxu0 0
      %682 = vmatpush1.bf16.msra.mxu0 0
      %683 = vmatprep.mubr.bf16.mxu0 0
      %684 = vmatmul.mubr.bf16.gmra.mrb[0].mxu0 %v572
      %v685 = vpop.f32.mrb[0].mxu0
      %v686 = vadd.f32 %v601, %v685
      %v687 = vpop.f32.mrb[0].mxu0
      %v688 = vpop.f32.mrb[0].mxu0
      %v689 = vadd.f32 %v601, %v688
      %v690 = vpop.f32.mrb[0].mxu0
      %691 = vmatprep.mubr.bf16.mxu0 0
      %692 = vmatmul.mubr.bf16.gmra.mrb[0].mxu0 %v573
      %v693 = vpop.f32.mrb[0].mxu0
      %v694 = vadd.f32 %v601, %v693
      %v695 = vpop.f32.mrb[0].mxu0
      %v696 = vpop.f32.mrb[0].mxu0
      %v697 = vadd.f32 %v601, %v696
      %v698 = vpop.f32.mrb[0].mxu0
      %699 = vmatprep.mubr.bf16.mxu0 0
      %700 = vmatmul.mubr.bf16.gmra.mrb[0].mxu0 %v574
      %v701 = vpop.f32.mrb[0].mxu0
      %v702 = vadd.f32 %v601, %v701
      %v703 = vpop.f32.mrb[0].mxu0
      %v704 = vpop.f32.mrb[0].mxu0
      %v705 = vadd.f32 %v601, %v704
      %v706 = vpop.f32.mrb[0].mxu0
      %707 = vmatprep.mubr.bf16.mxu0 0
      %708 = vmatmul.mubr.bf16.gmra.mrb[0].mxu0 %v575
      %v709 = vpop.f32.mrb[0].mxu0
      %v710 = vadd.f32 %v601, %v709
      %v711 = vpop.f32.mrb[0].mxu0
      %v712 = vpop.f32.mrb[0].mxu0
      %v713 = vadd.f32 %v601, %v712
      %v714 = vpop.f32.mrb[0].mxu0
      %715 = vmatprep.mubr.bf16.mxu0 0
      %716 = vmatmul.mubr.bf16.gmra.mrb[0].mxu0 %v576
      %v717 = vpop.f32.mrb[0].mxu0
      %v718 = vadd.f32 %v601, %v717
      %v719 = vpop.f32.mrb[0].mxu0
      %v720 = vpop.f32.mrb[0].mxu0
      %v721 = vadd.f32 %v601, %v720
      %v722 = vpop.f32.mrb[0].mxu0
      %723 = vmatprep.mubr.bf16.mxu0 0
      %724 = vmatmul.mubr.bf16.gmra.mrb[0].mxu0 %v577
      %v725 = vpop.f32.mrb[0].mxu0
      %v726 = vadd.f32 %v601, %v725
      %v727 = vpop.f32.mrb[0].mxu0
      %v728 = vpop.f32.mrb[0].mxu0
      %v729 = vadd.f32 %v601, %v728
      %v730 = vpop.f32.mrb[0].mxu0
      %731 = vmatprep.mubr.bf16.mxu0 0
      %732 = vmatmul.mubr.bf16.gmra.mrb[0].mxu0 %v578
      %v733 = vpop.f32.mrb[0].mxu0
      %v734 = vadd.f32 %v601, %v733
      %v735 = vpop.f32.mrb[0].mxu0
      %v736 = vpop.f32.mrb[0].mxu0
      %v737 = vadd.f32 %v601, %v736
      %v738 = vpop.f32.mrb[0].mxu0
      %739 = vmatprep.mubr.bf16.mxu0 0
      %740 = vmatmul.mubr.bf16.gmra.mrb[0].mxu0 %v579
      %v741 = vpop.f32.mrb[0].mxu0
      %v742 = vadd.f32 %v601, %v741
      %v743 = vpop.f32.mrb[0].mxu0
      %v744 = vpop.f32.mrb[0].mxu0
      %v745 = vadd.f32 %v601, %v744
      %v746 = vpop.f32.mrb[0].mxu0
      %747 = vdwg.mxu0
      %v748 = vmax.f32 %v686, 0.0
      %v749 = vmax.f32 %v689, 0.0
      %v750 = vmax.f32 %v694, 0.0
      %v751 = vmax.f32 %v697, 0.0
      %v752 = vmax.f32 %v702, 0.0
      %v753 = vmax.f32 %v705, 0.0
      %v754 = vmax.f32 %v710, 0.0
      %v755 = vmax.f32 %v713, 0.0
      %v756 = vmax.f32 %v718, 0.0
      %v757 = vmax.f32 %v721, 0.0
      %v758 = vmax.f32 %v726, 0.0
      %v759 = vmax.f32 %v729, 0.0
      %v760 = vmax.f32 %v734, 0.0
      %v761 = vmax.f32 %v737, 0.0
      %v762 = vmax.f32 %v742, 0.0
      %v763 = vmax.f32 %v745, 0.0
      %v764 = vpack.c.bf16 %v749, %v748
      %v765 = vpack.c.bf16 %v751, %v750
      %v766 = vpack.c.bf16 %v753, %v752
      %v767 = vpack.c.bf16 %v755, %v754
      %v768 = vpack.c.bf16 %v757, %v756
      %v769 = vpack.c.bf16 %v759, %v758
      %v770 = vpack.c.bf16 %v761, %v760
      %v771 = vpack.c.bf16 %v763, %v762
      %v772 = vld [vmem:[#allocation11] sm:$0xf]
      %v773 = vld [vmem:[#allocation11 + $0x4] sm:$0xf]
      %v774 = vld [vmem:[#allocation11 + $0x8] sm:$0xf]
      %v775 = vld [vmem:[#allocation11 + $0xc] sm:$0xf]
      %v776 = vld [vmem:[#allocation11 + $0x10] sm:$0xf]
      %v777 = vld [vmem:[#allocation11 + $0x14] sm:$0xf]
      %v778 = vld [vmem:[#allocation11 + $0x18] sm:$0xf]
      %v779 = vld [vmem:[#allocation11 + $0x1c] sm:$0xf]
      %v780 = vld [vmem:[#allocation11 + $0x20] sm:$0xf]
      %v781 = vld [vmem:[#allocation11 + $0x24] sm:$0xf]
      %v782 = vld [vmem:[#allocation11 + $0x28] sm:$0xf]
      %v783 = vld [vmem:[#allocation11 + $0x2c] sm:$0xf]
      %v784 = vld [vmem:[#allocation11 + $0x30] sm:$0xf]
      %v785 = vld [vmem:[#allocation11 + $0x34] sm:$0xf]
      %v786 = vld [vmem:[#allocation11 + $0x38] sm:$0xf]
      %v787 = vld [vmem:[#allocation11 + $0x3c] sm:$0xf]
      %v788 = vld [vmem:[%s6] sm:$0x1]
      %v790 = vlaneseq
      %v791 = vshrl.u32 %v790, 7
      %v792 = vsub.s32 0, %v791
      %v793 = vrot.slane %v788, %v792
      %v811 = vunpack.c.l.b16 %v772
      %v812 = vunpack.c.l.b16 %v773
      %v813 = vunpack.c.l.b16 %v774
      %v814 = vunpack.c.l.b16 %v775
      %v815 = vunpack.c.l.b16 %v776
      %v816 = vunpack.c.l.b16 %v777
      %v817 = vunpack.c.l.b16 %v778
      %v818 = vunpack.c.l.b16 %v779
      %v819 = vunpack.c.l.b16 %v780
      %v820 = vunpack.c.l.b16 %v781
      %v821 = vunpack.c.l.b16 %v782
      %v822 = vunpack.c.l.b16 %v783
      %v823 = vunpack.c.l.b16 %v784
      %v824 = vunpack.c.l.b16 %v785
      %v825 = vunpack.c.l.b16 %v786
      %v826 = vunpack.c.l.b16 %v787
      %v827 = vpack.c.b16 %v812, %v811
      %v828 = vpack.c.b16 %v814, %v813
      %v829 = vpack.c.b16 %v816, %v815
      %v830 = vpack.c.b16 %v818, %v817
      %v831 = vpack.c.b16 %v820, %v819
      %v832 = vpack.c.b16 %v822, %v821
      %v833 = vpack.c.b16 %v824, %v823
      %v834 = vpack.c.b16 %v826, %v825
      %843 = vmatprep.subr.bf16.mxu0 0
      %844 = vmatpush1.bf16.msra.mxu0 %v827
      %845 = vmatprep.subr.bf16.mxu0 0
      %846 = vmatpush1.bf16.msra.mxu0 %v828
      %847 = vmatprep.subr.bf16.mxu0 0
      %848 = vmatpush1.bf16.msra.mxu0 %v829
      %849 = vmatprep.subr.bf16.mxu0 0
      %850 = vmatpush1.bf16.msra.mxu0 %v830
      %851 = vmatprep.subr.bf16.mxu0 0
      %852 = vmatpush1.bf16.msra.mxu0 %v831
      %853 = vmatprep.subr.bf16.mxu0 0
      %854 = vmatpush1.bf16.msra.mxu0 %v832
      %855 = vmatprep.subr.bf16.mxu0 0
      %856 = vmatpush1.bf16.msra.mxu0 %v833
      %857 = vmatprep.subr.bf16.mxu0 0
      %858 = vmatpush1.bf16.msra.mxu0 %v834
      %859 = vmatprep.subr.bf16.mxu0 0
      %860 = vmatpush1.bf16.msra.mxu0 0
      %861 = vmatprep.subr.bf16.mxu0 0
      %862 = vmatpush1.bf16.msra.mxu0 0
      %863 = vmatprep.subr.bf16.mxu0 0
      %864 = vmatpush1.bf16.msra.mxu0 0
      %865 = vmatprep.subr.bf16.mxu0 0
      %866 = vmatpush1.bf16.msra.mxu0 0
      %867 = vmatprep.subr.bf16.mxu0 0
      %868 = vmatpush1.bf16.msra.mxu0 0
      %869 = vmatprep.subr.bf16.mxu0 0
      %870 = vmatpush1.bf16.msra.mxu0 0
      %871 = vmatprep.subr.bf16.mxu0 0
      %872 = vmatpush1.bf16.msra.mxu0 0
      %873 = vmatprep.subr.bf16.mxu0 0
      %874 = vmatpush1.bf16.msra.mxu0 0
      %875 = vmatprep.mubr.bf16.mxu0 0
      %876 = vmatmul.mubr.bf16.gmra.mrb[0].mxu0 %v764
      %v877 = vpop.f32.mrb[0].mxu0
      %v878 = vadd.f32 %v793, %v877
      %v879 = vpop.f32.mrb[0].mxu0
      %v880 = vpop.f32.mrb[0].mxu0
      %v881 = vadd.f32 %v793, %v880
      %v882 = vpop.f32.mrb[0].mxu0
      %883 = vmatprep.mubr.bf16.mxu0 0
      %884 = vmatmul.mubr.bf16.gmra.mrb[0].mxu0 %v765
      %v885 = vpop.f32.mrb[0].mxu0
      %v886 = vadd.f32 %v793, %v885
      %v887 = vpop.f32.mrb[0].mxu0
      %v888 = vpop.f32.mrb[0].mxu0
      %v889 = vadd.f32 %v793, %v888
      %v890 = vpop.f32.mrb[0].mxu0
      %891 = vmatprep.mubr.bf16.mxu0 0
      %892 = vmatmul.mubr.bf16.gmra.mrb[0].mxu0 %v766
      %v893 = vpop.f32.mrb[0].mxu0
      %v894 = vadd.f32 %v793, %v893
      %v895 = vpop.f32.mrb[0].mxu0
      %v896 = vpop.f32.mrb[0].mxu0
      %v897 = vadd.f32 %v793, %v896
      %v898 = vpop.f32.mrb[0].mxu0
      %899 = vmatprep.mubr.bf16.mxu0 0
      %900 = vmatmul.mubr.bf16.gmra.mrb[0].mxu0 %v767
      %v901 = vpop.f32.mrb[0].mxu0
      %v902 = vadd.f32 %v793, %v901
      %v903 = vpop.f32.mrb[0].mxu0
      %v904 = vpop.f32.mrb[0].mxu0
      %v905 = vadd.f32 %v793, %v904
      %v906 = vpop.f32.mrb[0].mxu0
      %907 = vmatprep.mubr.bf16.mxu0 0
      %908 = vmatmul.mubr.bf16.gmra.mrb[0].mxu0 %v768
      %v909 = vpop.f32.mrb[0].mxu0
      %v910 = vadd.f32 %v793, %v909
      %v911 = vpop.f32.mrb[0].mxu0
      %v912 = vpop.f32.mrb[0].mxu0
      %v913 = vadd.f32 %v793, %v912
      %v914 = vpop.f32.mrb[0].mxu0
      %915 = vmatprep.mubr.bf16.mxu0 0
      %916 = vmatmul.mubr.bf16.gmra.mrb[0].mxu0 %v769
      %v917 = vpop.f32.mrb[0].mxu0
      %v918 = vadd.f32 %v793, %v917
      %v919 = vpop.f32.mrb[0].mxu0
      %v920 = vpop.f32.mrb[0].mxu0
      %v921 = vadd.f32 %v793, %v920
      %v922 = vpop.f32.mrb[0].mxu0
      %923 = vmatprep.mubr.bf16.mxu0 0
      %924 = vmatmul.mubr.bf16.gmra.mrb[0].mxu0 %v770
      %v925 = vpop.f32.mrb[0].mxu0
      %v926 = vadd.f32 %v793, %v925
      %v927 = vpop.f32.mrb[0].mxu0
      %v928 = vpop.f32.mrb[0].mxu0
      %v929 = vadd.f32 %v793, %v928
      %v930 = vpop.f32.mrb[0].mxu0
      %931 = vmatprep.mubr.bf16.mxu0 0
      %932 = vmatmul.mubr.bf16.gmra.mrb[0].mxu0 %v771
      %v933 = vpop.f32.mrb[0].mxu0
      %v934 = vadd.f32 %v793, %v933
      %v935 = vpop.f32.mrb[0].mxu0
      %v936 = vpop.f32.mrb[0].mxu0
      %v937 = vadd.f32 %v793, %v936
      %v938 = vpop.f32.mrb[0].mxu0
      %939 = vdwg.mxu0
      %v940 = vmax.f32 %v878, 0.0
      %v941 = vmax.f32 %v881, 0.0
      %v942 = vmax.f32 %v886, 0.0
      %v943 = vmax.f32 %v889, 0.0
      %v944 = vmax.f32 %v894, 0.0
      %v945 = vmax.f32 %v897, 0.0
      %v946 = vmax.f32 %v902, 0.0
      %v947 = vmax.f32 %v905, 0.0
      %v948 = vmax.f32 %v910, 0.0
      %v949 = vmax.f32 %v913, 0.0
      %v950 = vmax.f32 %v918, 0.0
      %v951 = vmax.f32 %v921, 0.0
      %v952 = vmax.f32 %v926, 0.0
      %v953 = vmax.f32 %v929, 0.0
      %v954 = vmax.f32 %v934, 0.0
      %v955 = vmax.f32 %v937, 0.0
      %v956 = vld [vmem:[#allocation8] sm:$0xf]
      %v957 = vld [vmem:[#allocation8 + $0x4] sm:$0xf]
      %v958 = vld [vmem:[#allocation8 + $0x8] sm:$0xf]
      %v959 = vld [vmem:[#allocation8 + $0xc] sm:$0xf]
      %v960 = vld [vmem:[#allocation8 + $0x10] sm:$0xf]
      %v961 = vld [vmem:[#allocation8 + $0x14] sm:$0xf]
      %v962 = vld [vmem:[#allocation8 + $0x18] sm:$0xf]
      %v963 = vld [vmem:[#allocation8 + $0x1c] sm:$0xf]
      %v964 = vld [vmem:[#allocation8 + $0x20] sm:$0xf]
      %v965 = vld [vmem:[#allocation8 + $0x24] sm:$0xf]
      %v966 = vld [vmem:[#allocation8 + $0x28] sm:$0xf]
      %v967 = vld [vmem:[#allocation8 + $0x2c] sm:$0xf]
      %v968 = vld [vmem:[#allocation8 + $0x30] sm:$0xf]
      %v969 = vld [vmem:[#allocation8 + $0x34] sm:$0xf]
      %v970 = vld [vmem:[#allocation8 + $0x38] sm:$0xf]
      %v971 = vld [vmem:[#allocation8 + $0x3c] sm:$0xf]
      %v972 = vld [vmem:[#allocation12] sm:$0xf]
      %v973 = vld [vmem:[#allocation12 + $0x4] sm:$0xf]
      %v974 = vld [vmem:[#allocation12 + $0x8] sm:$0xf]
      %v975 = vld [vmem:[#allocation12 + $0xc] sm:$0xf]
      %v976 = vld [vmem:[#allocation12 + $0x10] sm:$0xf]
      %v977 = vld [vmem:[#allocation12 + $0x14] sm:$0xf]
      %v978 = vld [vmem:[#allocation12 + $0x18] sm:$0xf]
      %v979 = vld [vmem:[#allocation12 + $0x1c] sm:$0xf]
      %v980 = vld [vmem:[#allocation12 + $0x20] sm:$0xf]
      %v981 = vld [vmem:[#allocation12 + $0x24] sm:$0xf]
      %v982 = vld [vmem:[#allocation12 + $0x28] sm:$0xf]
      %v983 = vld [vmem:[#allocation12 + $0x2c] sm:$0xf]
      %v984 = vld [vmem:[#allocation12 + $0x30] sm:$0xf]
      %v985 = vld [vmem:[#allocation12 + $0x34] sm:$0xf]
      %v986 = vld [vmem:[#allocation12 + $0x38] sm:$0xf]
      %v987 = vld [vmem:[#allocation12 + $0x3c] sm:$0xf]
      %v988 = vld [vmem:[%s8] sm:$0x1]
      %v990 = vlaneseq
      %v991 = vshrl.u32 %v990, 7
      %v992 = vsub.s32 0, %v991
      %v993 = vrot.slane %v988, %v992
      %v1011 = vunpack.c.l.b16 %v956
      %v1012 = vunpack.c.l.b16 %v957
      %v1013 = vunpack.c.l.b16 %v958
      %v1014 = vunpack.c.l.b16 %v959
      %v1015 = vunpack.c.l.b16 %v960
      %v1016 = vunpack.c.l.b16 %v961
      %v1017 = vunpack.c.l.b16 %v962
      %v1018 = vunpack.c.l.b16 %v963
      %v1019 = vunpack.c.l.b16 %v964
      %v1020 = vunpack.c.l.b16 %v965
      %v1021 = vunpack.c.l.b16 %v966
      %v1022 = vunpack.c.l.b16 %v967
      %v1023 = vunpack.c.l.b16 %v968
      %v1024 = vunpack.c.l.b16 %v969
      %v1025 = vunpack.c.l.b16 %v970
      %v1026 = vunpack.c.l.b16 %v971
      %v1027 = vpack.c.b16 %v1012, %v1011
      %v1028 = vpack.c.b16 %v1014, %v1013
      %v1029 = vpack.c.b16 %v1016, %v1015
      %v1030 = vpack.c.b16 %v1018, %v1017
      %v1031 = vpack.c.b16 %v1020, %v1019
      %v1032 = vpack.c.b16 %v1022, %v1021
      %v1033 = vpack.c.b16 %v1024, %v1023
      %v1034 = vpack.c.b16 %v1026, %v1025
      %v1059 = vunpack.c.l.b16 %v972
      %v1060 = vunpack.c.l.b16 %v973
      %v1061 = vunpack.c.l.b16 %v974
      %v1062 = vunpack.c.l.b16 %v975
      %v1063 = vunpack.c.l.b16 %v976
      %v1064 = vunpack.c.l.b16 %v977
      %v1065 = vunpack.c.l.b16 %v978
      %v1066 = vunpack.c.l.b16 %v979
      %v1067 = vunpack.c.l.b16 %v980
      %v1068 = vunpack.c.l.b16 %v981
      %v1069 = vunpack.c.l.b16 %v982
      %v1070 = vunpack.c.l.b16 %v983
      %v1071 = vunpack.c.l.b16 %v984
      %v1072 = vunpack.c.l.b16 %v985
      %v1073 = vunpack.c.l.b16 %v986
      %v1074 = vunpack.c.l.b16 %v987
      %v1075 = vpack.c.b16 %v1060, %v1059
      %v1076 = vpack.c.b16 %v1062, %v1061
      %v1077 = vpack.c.b16 %v1064, %v1063
      %v1078 = vpack.c.b16 %v1066, %v1065
      %v1079 = vpack.c.b16 %v1068, %v1067
      %v1080 = vpack.c.b16 %v1070, %v1069
      %v1081 = vpack.c.b16 %v1072, %v1071
      %v1082 = vpack.c.b16 %v1074, %v1073
      %1091 = vmatprep.subr.bf16.mxu0 0
      %1092 = vmatpush1.bf16.msra.mxu0 %v1075
      %1093 = vmatprep.subr.bf16.mxu0 0
      %1094 = vmatpush1.bf16.msra.mxu0 %v1076
      %1095 = vmatprep.subr.bf16.mxu0 0
      %1096 = vmatpush1.bf16.msra.mxu0 %v1077
      %1097 = vmatprep.subr.bf16.mxu0 0
      %1098 = vmatpush1.bf16.msra.mxu0 %v1078
      %1099 = vmatprep.subr.bf16.mxu0 0
      %1100 = vmatpush1.bf16.msra.mxu0 %v1079
      %1101 = vmatprep.subr.bf16.mxu0 0
      %1102 = vmatpush1.bf16.msra.mxu0 %v1080
      %1103 = vmatprep.subr.bf16.mxu0 0
      %1104 = vmatpush1.bf16.msra.mxu0 %v1081
      %1105 = vmatprep.subr.bf16.mxu0 0
      %1106 = vmatpush1.bf16.msra.mxu0 %v1082
      %1107 = vmatprep.subr.bf16.mxu0 0
      %1108 = vmatpush1.bf16.msra.mxu0 0
      %1109 = vmatprep.subr.bf16.mxu0 0
      %1110 = vmatpush1.bf16.msra.mxu0 0
      %1111 = vmatprep.subr.bf16.mxu0 0
      %1112 = vmatpush1.bf16.msra.mxu0 0
      %1113 = vmatprep.subr.bf16.mxu0 0
      %1114 = vmatpush1.bf16.msra.mxu0 0
      %1115 = vmatprep.subr.bf16.mxu0 0
      %1116 = vmatpush1.bf16.msra.mxu0 0
      %1117 = vmatprep.subr.bf16.mxu0 0
      %1118 = vmatpush1.bf16.msra.mxu0 0
      %1119 = vmatprep.subr.bf16.mxu0 0
      %1120 = vmatpush1.bf16.msra.mxu0 0
      %1121 = vmatprep.subr.bf16.mxu0 0
      %1122 = vmatpush1.bf16.msra.mxu0 0
      %1123 = vmatprep.mubr.bf16.mxu0 0
      %1124 = vmatmul.mubr.bf16.gmra.mrb[0].mxu0 %v1027
      %v1125 = vpop.f32.mrb[0].mxu0
      %v1126 = vadd.f32 %v993, %v1125
      %v1127 = vpop.f32.mrb[0].mxu0
      %v1128 = vpop.f32.mrb[0].mxu0
      %v1129 = vadd.f32 %v993, %v1128
      %v1130 = vpop.f32.mrb[0].mxu0
      %1131 = vmatprep.mubr.bf16.mxu0 0
      %1132 = vmatmul.mubr.bf16.gmra.mrb[0].mxu0 %v1028
      %v1133 = vpop.f32.mrb[0].mxu0
      %v1134 = vadd.f32 %v993, %v1133
      %v1135 = vpop.f32.mrb[0].mxu0
      %v1136 = vpop.f32.mrb[0].mxu0
      %v1137 = vadd.f32 %v993, %v1136
      %v1138 = vpop.f32.mrb[0].mxu0
      %1139 = vmatprep.mubr.bf16.mxu0 0
      %1140 = vmatmul.mubr.bf16.gmra.mrb[0].mxu0 %v1029
      %v1141 = vpop.f32.mrb[0].mxu0
      %v1142 = vadd.f32 %v993, %v1141
      %v1143 = vpop.f32.mrb[0].mxu0
      %v1144 = vpop.f32.mrb[0].mxu0
      %v1145 = vadd.f32 %v993, %v1144
      %v1146 = vpop.f32.mrb[0].mxu0
      %1147 = vmatprep.mubr.bf16.mxu0 0
      %1148 = vmatmul.mubr.bf16.gmra.mrb[0].mxu0 %v1030
      %v1149 = vpop.f32.mrb[0].mxu0
      %v1150 = vadd.f32 %v993, %v1149
      %v1151 = vpop.f32.mrb[0].mxu0
      %v1152 = vpop.f32.mrb[0].mxu0
      %v1153 = vadd.f32 %v993, %v1152
      %v1154 = vpop.f32.mrb[0].mxu0
      %1155 = vmatprep.mubr.bf16.mxu0 0
      %1156 = vmatmul.mubr.bf16.gmra.mrb[0].mxu0 %v1031
      %v1157 = vpop.f32.mrb[0].mxu0
      %v1158 = vadd.f32 %v993, %v1157
      %v1159 = vpop.f32.mrb[0].mxu0
      %v1160 = vpop.f32.mrb[0].mxu0
      %v1161 = vadd.f32 %v993, %v1160
      %v1162 = vpop.f32.mrb[0].mxu0
      %1163 = vmatprep.mubr.bf16.mxu0 0
      %1164 = vmatmul.mubr.bf16.gmra.mrb[0].mxu0 %v1032
      %v1165 = vpop.f32.mrb[0].mxu0
      %v1166 = vadd.f32 %v993, %v1165
      %v1167 = vpop.f32.mrb[0].mxu0
      %v1168 = vpop.f32.mrb[0].mxu0
      %v1169 = vadd.f32 %v993, %v1168
      %v1170 = vpop.f32.mrb[0].mxu0
      %1171 = vmatprep.mubr.bf16.mxu0 0
      %1172 = vmatmul.mubr.bf16.gmra.mrb[0].mxu0 %v1033
      %v1173 = vpop.f32.mrb[0].mxu0
      %v1174 = vadd.f32 %v993, %v1173
      %v1175 = vpop.f32.mrb[0].mxu0
      %v1176 = vpop.f32.mrb[0].mxu0
      %v1177 = vadd.f32 %v993, %v1176
      %v1178 = vpop.f32.mrb[0].mxu0
      %1179 = vmatprep.mubr.bf16.mxu0 0
      %1180 = vmatmul.mubr.bf16.gmra.mrb[0].mxu0 %v1034
      %v1181 = vpop.f32.mrb[0].mxu0
      %v1182 = vadd.f32 %v993, %v1181
      %v1183 = vpop.f32.mrb[0].mxu0
      %v1184 = vpop.f32.mrb[0].mxu0
      %v1185 = vadd.f32 %v993, %v1184
      %v1186 = vpop.f32.mrb[0].mxu0
      %1187 = vdwg.mxu0
      %v1188 = vadd.f32 %v1126, %v940
      %v1189 = vadd.f32 %v1129, %v941
      %v1190 = vadd.f32 %v1134, %v942
      %v1191 = vadd.f32 %v1137, %v943
      %v1192 = vadd.f32 %v1142, %v944
      %v1193 = vadd.f32 %v1145, %v945
      %v1194 = vadd.f32 %v1150, %v946
      %v1195 = vadd.f32 %v1153, %v947
      %v1196 = vadd.f32 %v1158, %v948
      %v1197 = vadd.f32 %v1161, %v949
      %v1198 = vadd.f32 %v1166, %v950
      %v1199 = vadd.f32 %v1169, %v951
      %v1200 = vadd.f32 %v1174, %v952
      %v1201 = vadd.f32 %v1177, %v953
      %v1202 = vadd.f32 %v1182, %v954
      %v1203 = vadd.f32 %v1185, %v955
      %1204 = vst [vmem:[#allocation14] sm:$0xff] %v1188
      %1205 = vst [vmem:[#allocation14 + $0x8] sm:$0xff] %v1189
      %1206 = vst [vmem:[#allocation14 + $0x10] sm:$0xff] %v1190
      %1207 = vst [vmem:[#allocation14 + $0x18] sm:$0xff] %v1191
      %1208 = vst [vmem:[#allocation14 + $0x20] sm:$0xff] %v1192
      %1209 = vst [vmem:[#allocation14 + $0x28] sm:$0xff] %v1193
      %1210 = vst [vmem:[#allocation14 + $0x30] sm:$0xff] %v1194
      %1211 = vst [vmem:[#allocation14 + $0x38] sm:$0xff] %v1195
      %1212 = vst [vmem:[#allocation14 + $0x40] sm:$0xff] %v1196
      %1213 = vst [vmem:[#allocation14 + $0x48] sm:$0xff] %v1197
      %1214 = vst [vmem:[#allocation14 + $0x50] sm:$0xff] %v1198
      %1215 = vst [vmem:[#allocation14 + $0x58] sm:$0xff] %v1199
      %1216 = vst [vmem:[#allocation14 + $0x60] sm:$0xff] %v1200
      %1217 = vst [vmem:[#allocation14 + $0x68] sm:$0xff] %v1201
      %1218 = vst [vmem:[#allocation14 + $0x70] sm:$0xff] %v1202
      %1219 = vst [vmem:[#allocation14 + $0x78] sm:$0xff] %v1203
    $region69: #{tpu_custom_call.1} parent=1 // pred_fallthru
      _
    // Predicated region
    $region70: #{tpu_custom_call.1} parent=1 // pred_check
      _
    $region71: #{tpu_custom_call.1} parent=1 // pred_check_branch
      %1221 = sbr.rel (0) target = $region73
    $region72: #{tpu_custom_call.1} parent=1 // pred_region
      %s1223 = ssub.s32 2048, 2048
      %1224 = vsyncadd [#allocation5], %s1223
      %s1225 = sshll.u32 [#allocation14], 4
      %s1226 = int_to_ptr.vmem [resolvable:$true] %s1225
      %1231 = dma.vmem_to_hbm [thread:$0]  %s1226, 2048, %s9, [#allocation5], 128, 128, 8
    $region73: #{tpu_custom_call.1} parent=1 // pred_fallthru
      _
    // Predicated region
    $region74: #{tpu_custom_call.1} parent=1 // pred_check
      _
    $region75: #{tpu_custom_call.1} parent=1 // pred_check_branch
      %1233 = sbr.rel (0) target = $region77
    $region76: #{tpu_custom_call.1} parent=1 // pred_region
      %1234 = dma.done [#allocation5], 2048
    $region77: #{tpu_custom_call.1} parent=1 // pred_fallthru
      _
    %1235 = vsyncpa [#allocation4], 1
    %1236 = vsyncpa [#allocation7], 1
    %1237 = vsyncpa [#allocation10], 1
    %1238 = vsyncpa [#allocation13], 1
    %1239 = vsyncpa [#allocation5], 1

</llo_original>
